<compile_context>
chip_gen: v6e
topology: v6e:2x2x1
jax: 0.10.0
libtpu: 0.0.40
codegen_flags: <defaults>
</compile_context>

<pallas_src>
import functools

import jax
import jax.numpy as jnp
from jax.experimental import pallas as pl
from jax.experimental.pallas import tpu as pltpu


def _ce_kernel(logits_ref, labels_ref, loss_ref, m_sc, l_sc, p_sc, *,
               num_classes, tile_c):
    # logits_ref: (T, TC) input dtype      labels_ref: (1, 1, T) int32 (lane-dense)
    # loss_ref:   (1, 1, T) f32            m_sc/l_sc/p_sc: (T, 1) f32 scratch
    j = pl.program_id(1)
    t = logits_ref.shape[0]

    @pl.when(j == 0)
    def _init():
        m_sc[...] = jnp.full_like(m_sc, -jnp.inf)
        l_sc[...] = jnp.zeros_like(l_sc)
        p_sc[...] = jnp.zeros_like(p_sc)

    x = logits_ref[...]                                   # (T, TC) input dtype
    labels = labels_ref[...].reshape(1, t).T              # (T, 1) int32 (XLU, T elems)

    col = j * tile_c + jax.lax.broadcasted_iota(jnp.int32, x.shape, 1)
    hit = col == labels                                   # (T, TC); False for -100 / OOB

    # Label pick on the raw input-dtype logits (exact: at most one non-zero per row).
    p_sc[...] += jnp.sum(jnp.where(hit, x, jnp.zeros_like(x)),
                         axis=-1, keepdims=True).astype(jnp.float32)

    if num_classes % tile_c == 0:
        # Row max in the input dtype is exact (bf16 included); upcast the column only.
        m_blk = jnp.max(x, axis=-1, keepdims=True).astype(jnp.float32)
        xf = x.astype(jnp.float32)
    else:
        # Ragged last C block: mask out-of-range class columns before max / exp.
        xf = jnp.where(col < num_classes, x.astype(jnp.float32), -jnp.inf)
        m_blk = jnp.max(xf, axis=-1, keepdims=True)

    m_prev = m_sc[...]
    m_new = jnp.maximum(m_prev, m_blk)
    l_sc[...] = (l_sc[...] * jnp.exp(m_prev - m_new)
                 + jnp.sum(jnp.exp(xf - m_new), axis=-1, keepdims=True))
    m_sc[...] = m_new

    @pl.when(j == pl.num_programs(1) - 1)
    def _finalize():
        loss = m_sc[...] + jnp.log(l_sc[...]) - p_sc[...]          # (T, 1) per-sample CE
        loss_lane = loss.T.reshape(1, 1, t)                        # lane-dense store
        ignore = labels_ref[...] == -100                           # PyTorch ignore_index
        loss_ref[...] = jnp.where(ignore, 0.0, loss_lane)


def _choose_tiles(n, c, dtype):
    """Pick (tile_n, tile_c, num_tiles_c).

    ~2 MiB per HBM-side logits tile: double-buffered by Pallas plus the f32 working set
    (upcast, exp, iota, select) this stays inside the default scoped-VMEM limits
    (16 MiB v5e, 32 MiB v6e/v7x) and well under v7x's 64 MiB physical VMEM.
    """
    itemsize = jnp.dtype(dtype).itemsize
    budget = 2 * 1024 * 1024

    # Class-axis tile: full C as one block when small enough, otherwise 128-aligned
    # blocks with an online log-sum-exp over the (last, "arbitrary") C grid axis.
    if c <= 4096:
        tile_c, num_tiles_c = c, 1
    else:
        tile_c = 2048
        num_tiles_c = pl.cdiv(c, tile_c)

    tile_n_budget = budget // max(1, tile_c * itemsize)
    tile_n_budget = max(16, min(1024, (tile_n_budget // 16) * 16))  # 16 covers f32 & bf16
    n_pad16 = -(-n // 16) * 16

    if n_pad16 <= tile_n_budget and n_pad16 > 16:
        # Whole batch would fit in one tile: split into two roughly-equal tiles so the
        # "parallel" batch axis has work for both v7x TensorCores.
        tile_n = -(-(n_pad16 // 2) // 16) * 16
    else:
        tile_n = min(tile_n_budget, n_pad16)
    return tile_n, tile_c, num_tiles_c


def _per_sample_cross_entropy(pred, label):
    """pred: (N, C) float, label: (N,) int -> per-sample loss (N,) float32."""
    n, c = pred.shape
    tile_n, tile_c, num_tiles_c = _choose_tiles(n, c, pred.dtype)
    num_tiles_n = pl.cdiv(n, tile_n)
    n_pad = num_tiles_n * tile_n

    # Labels: lane-dense (num_tiles_n, 1, tile_n) int32 blocks (tiny, contiguous DMA).
    # Logits stay unpadded -- the ragged last batch tile yields garbage rows that are
    # sliced off below; padded label rows are 0 (in range), so no NaN/inf leaks across rows.
    label_i32 = label.astype(jnp.int32)
    if n_pad != n:
        label_i32 = jnp.pad(label_i32, (0, n_pad - n))
    labels3d = label_i32.reshape(num_tiles_n, 1, tile_n)

    kernel = functools.partial(_ce_kernel, num_classes=c, tile_c=tile_c)
    itemsize = jnp.dtype(pred.dtype).itemsize
    cost = pl.CostEstimate(
        flops=5 * n * c,                 # compare/select/sub/add/max per element
        transcendentals=n * c,           # exp
        bytes_accessed=n * c * itemsize + n * 4 + n * 4,
    )

    out = pl.pallas_call(
        kernel,
        out_shape=jax.ShapeDtypeStruct((num_tiles_n, 1, tile_n), jnp.float32),
        grid_spec=pltpu.PrefetchScalarGridSpec(
            num_scalar_prefetch=0,
            grid=(num_tiles_n, num_tiles_c),            # class (reduction) axis last
            in_specs=[
                pl.BlockSpec((tile_n, tile_c), lambda i, j: (i, j)),    # logits tile
                pl.BlockSpec((1, 1, tile_n), lambda i, j: (i, 0, 0)),   # labels (lane-dense)
            ],
            out_specs=pl.BlockSpec((1, 1, tile_n), lambda i, j: (i, 0, 0)),
            scratch_shapes=[
                pltpu.VMEM((tile_n, 1), jnp.float32),   # running max
                pltpu.VMEM((tile_n, 1), jnp.float32),   # running sum-exp
                pltpu.VMEM((tile_n, 1), jnp.float32),   # picked label logit
            ],
        ),
        compiler_params=pltpu.CompilerParams(
            dimension_semantics=("parallel", "arbitrary"),
            vmem_limit_bytes=32 * 1024 * 1024,          # safe on v5e/v6e and v7x (64 MiB phys)
        ),
        cost_estimate=cost,
    )(pred, labels3d)
    return out.reshape(-1)[:n]


def weight_reduce_loss(loss, weight=None, reduction='mean', avg_factor=None):
    if weight is not None:
        loss = loss * weight.astype(jnp.float32)
    if avg_factor is None:
        if reduction == 'mean':
            return jnp.mean(loss)
        if reduction == 'sum':
            return jnp.sum(loss)
        return loss
    else:
        if reduction == 'mean':
            return jnp.sum(loss) / avg_factor
        if reduction == 'none':
            return loss
        raise ValueError('avg_factor can not be used with reduction="sum"')


def cross_entropy(pred, label, weight=None, reduction='mean', avg_factor=None):
    # TODO(synk): labels out of [0, C) other than ignore_index=-100 give a finite
    # (wrong) loss instead of raising like PyTorch; no in-kernel assert is emitted.
    # TODO(synk): optional in-kernel fused 'mean'/'sum' accumulator (scalar output,
    # batch axis "arbitrary") skipped to keep the batch axis "parallel" for megacore.
    loss = _per_sample_cross_entropy(pred, label)   # reduction='none' inside the kernel
    return weight_reduce_loss(loss, weight=weight, reduction=reduction,
                              avg_factor=avg_factor)


class CrossEntropyLoss:
    """JAX/Pallas port of the PyTorch CrossEntropyLoss wrapper module."""

    def __init__(self, reduction='mean', loss_weight=1.0):
        self.reduction = reduction
        self.loss_weight = loss_weight
        self.cls_criterion = cross_entropy

    def __call__(self, cls_score, label, weight=None, avg_factor=None,
                 reduction_override=None, **kwargs):
        assert reduction_override in (None, 'none', 'mean', 'sum')
        reduction = reduction_override if reduction_override else self.reduction
        loss_cls = self.loss_weight * self.cls_criterion(
            cls_score, label, weight, reduction=reduction,
            avg_factor=avg_factor, **kwargs)
        return loss_cls


if __name__ == "__main__":
    key = jax.random.PRNGKey(0)
    k1, k2, k3, k4 = jax.random.split(key, 4)

    loss_mod = CrossEntropyLoss(reduction='mean', loss_weight=1.0)

    # test 1: batch=8, num_classes=32, reduction='mean'
    N, C = 8, 32
    cls_score = jax.random.normal(k1, (N, C), dtype=jnp.float32)
    label = jax.random.randint(k2, (N,), 0, C, dtype=jnp.int32)

    loss = loss_mod(cls_score, label)
    jax.block_until_ready(loss)

    logp = jax.nn.log_softmax(cls_score, axis=-1)
    ref = -jnp.mean(jnp.take_along_axis(logp, label[:, None], axis=-1))
    assert jnp.allclose(loss, ref, atol=1e-5, rtol=1e-5), (loss, ref)

    # test 2: odd shapes (batch padding + non-128 class dim + >1 batch tile), 'none'
    N2, C2 = 37, 21
    cls_score2 = jax.random.normal(k3, (N2, C2), dtype=jnp.float32)
    label2 = jax.random.randint(k4, (N2,), 0, C2, dtype=jnp.int32)

    loss2 = loss_mod(cls_score2, label2, reduction_override='none')
    jax.block_until_ready(loss2)

    logp2 = jax.nn.log_softmax(cls_score2, axis=-1)
    ref2 = -jnp.take_along_axis(logp2, label2[:, None], axis=-1).reshape(-1)
    assert loss2.shape == (N2,)
    assert jnp.allclose(loss2, ref2, atol=1e-5, rtol=1e-5), (loss2, ref2)

    # test 3: ignore_index=-100 rows produce zero per-sample loss (PyTorch default)
    label3 = label2.at[::5].set(-100)
    loss3 = loss_mod(cls_score2, label3, reduction_override='none')
    jax.block_until_ready(loss3)
    safe = jnp.where(label3 < 0, 0, label3)
    ref3 = jnp.where(
        label3 < 0, 0.0,
        -jnp.take_along_axis(logp2, safe[:, None], axis=-1).reshape(-1))
    assert jnp.allclose(loss3, ref3, atol=1e-5, rtol=1e-5), (loss3, ref3)

    print("KERNEL_OK")
</pallas_src>

<mosaic_0001>
module attributes {stable_mosaic.version = 11 : i64} {
  func.func @_ce_kernel(%arg0: i32, %arg1: i32, %arg2: memref<16x32xf32, #tpu.memory_space<vmem>>, %arg3: memref<1x1x16xi32, #tpu.memory_space<vmem>>, %arg4: memref<1x1x16xf32, #tpu.memory_space<vmem>>, %arg5: memref<16x1xf32, #tpu.memory_space<vmem>>, %arg6: memref<16x1xf32, #tpu.memory_space<vmem>>, %arg7: memref<16x1xf32, #tpu.memory_space<vmem>>) attributes {dimension_semantics = [#tpu.dimension_semantics<parallel>, #tpu.dimension_semantics<arbitrary>], iteration_bounds = array<i64: 1, 1>, scalar_prefetch = 0 : i64, scratch_operands = 3 : i64, tpu.core_type = #tpu.core_type<tc>, window_params = [{transform_indices = @transform_0, window_bounds = array<i64: 16, 32>}, {transform_indices = @transform_1, window_bounds = array<i64: 1, 1, 16>}, {transform_indices = @transform_2, window_bounds = array<i64: 1, 1, 16>}]} {
    %c0_i32 = arith.constant 0 : i32
    %0 = arith.cmpi eq, %arg1, %c0_i32 : i32
    %1 = arith.extui %0 : i1 to i32
    %c0_i32_0 = arith.constant 0 : i32
    %2 = arith.cmpi ne, %1, %c0_i32_0 : i32
    scf.if %2 {
      %cst_22 = arith.constant 0xFF800000 : f32
      %39 = vector.broadcast %cst_22 : f32 to vector<16x1xf32>
      %c0_23 = arith.constant 0 : index
      %c0_24 = arith.constant 0 : index
      %40 = vector.load %arg5[%c0_23, %c0_24] : memref<16x1xf32, #tpu.memory_space<vmem>>, vector<16x1xf32>
      tpu.vector_store %arg5[%c0_23, %c0_24], %39 {strides = array<i32>} : memref<16x1xf32, #tpu.memory_space<vmem>>, vector<16x1xf32>,
      %cst_25 = arith.constant 0.000000e+00 : f32
      %41 = vector.broadcast %cst_25 : f32 to vector<16x1xf32>
      %c0_26 = arith.constant 0 : index
      %c0_27 = arith.constant 0 : index
      %42 = vector.load %arg6[%c0_26, %c0_27] : memref<16x1xf32, #tpu.memory_space<vmem>>, vector<16x1xf32>
      tpu.vector_store %arg6[%c0_26, %c0_27], %41 {strides = array<i32>} : memref<16x1xf32, #tpu.memory_space<vmem>>, vector<16x1xf32>,
      %cst_28 = arith.constant 0.000000e+00 : f32
      %43 = vector.broadcast %cst_28 : f32 to vector<16x1xf32>
      %c0_29 = arith.constant 0 : index
      %c0_30 = arith.constant 0 : index
      %44 = vector.load %arg7[%c0_29, %c0_30] : memref<16x1xf32, #tpu.memory_space<vmem>>, vector<16x1xf32>
      tpu.vector_store %arg7[%c0_29, %c0_30], %43 {strides = array<i32>} : memref<16x1xf32, #tpu.memory_space<vmem>>, vector<16x1xf32>,
    } else {
    }
    %c0 = arith.constant 0 : index
    %c0_1 = arith.constant 0 : index
    %3 = vector.load %arg2[%c0, %c0_1] : memref<16x32xf32, #tpu.memory_space<vmem>>, vector<16x32xf32>
    %c0_2 = arith.constant 0 : index
    %c0_3 = arith.constant 0 : index
    %c0_4 = arith.constant 0 : index
    %4 = vector.load %arg3[%c0_2, %c0_3, %c0_4] : memref<1x1x16xi32, #tpu.memory_space<vmem>>, vector<1x1x16xi32>
    %5 = vector.shape_cast %4 : vector<1x1x16xi32> to vector<1x16xi32>
    %6 = tpu.transpose %5, [1, 0] : vector<1x16xi32> -> vector<16x1xi32>
    %c32_i32 = arith.constant 32 : i32
    %7 = arith.muli %arg1, %c32_i32 : i32
    %8 = tpu.iota {dimensions = array<i32: 1>} : vector<16x32xi32>
    %9 = vector.broadcast %7 : i32 to vector<16x32xi32>
    %10 = arith.addi %9, %8 : vector<16x32xi32>
    %11 = vector.broadcast %6 : vector<16x1xi32> to vector<16x32xi32>
    %12 = arith.cmpi eq, %10, %11 : vector<16x32xi32>
    %c0_5 = arith.constant 0 : index
    %c0_6 = arith.constant 0 : index
    %13 = vector.load %arg7[%c0_5, %c0_6] : memref<16x1xf32, #tpu.memory_space<vmem>>, vector<16x1xf32>
    %cst = arith.constant 0.000000e+00 : f32
    %14 = vector.broadcast %cst : f32 to vector<16x32xf32>
    %15 = arith.select %12, %3, %14 : vector<16x32xi1>, vector<16x32xf32>
    %cst_7 = arith.constant dense<0.000000e+00> : vector<16xf32>
    %16 = vector.multi_reduction <add>, %15, %cst_7 [1] : vector<16x32xf32> to vector<16xf32>
    %17 = vector.shape_cast %16 : vector<16xf32> to vector<16x1xf32>
    %18 = arith.addf %13, %17 : vector<16x1xf32>
    %c0_8 = arith.constant 0 : index
    %c0_9 = arith.constant 0 : index
    %19 = vector.load %arg7[%c0_8, %c0_9] : memref<16x1xf32, #tpu.memory_space<vmem>>, vector<16x1xf32>
    tpu.vector_store %arg7[%c0_8, %c0_9], %18 {strides = array<i32>} : memref<16x1xf32, #tpu.memory_space<vmem>>, vector<16x1xf32>,
    %cst_10 = arith.constant dense<0xFF800000> : vector<16xf32>
    %20 = vector.multi_reduction <maximumf>, %3, %cst_10 [1] : vector<16x32xf32> to vector<16xf32>
    %21 = vector.shape_cast %20 : vector<16xf32> to vector<16x1xf32>
    %c0_11 = arith.constant 0 : index
    %c0_12 = arith.constant 0 : index
    %22 = vector.load %arg5[%c0_11, %c0_12] : memref<16x1xf32, #tpu.memory_space<vmem>>, vector<16x1xf32>
    %23 = arith.maximumf %22, %21 : vector<16x1xf32>
    %c0_13 = arith.constant 0 : index
    %c0_14 = arith.constant 0 : index
    %24 = vector.load %arg6[%c0_13, %c0_14] : memref<16x1xf32, #tpu.memory_space<vmem>>, vector<16x1xf32>
    %25 = arith.subf %22, %23 : vector<16x1xf32>
    %26 = math.exp %25 : vector<16x1xf32>
    %27 = arith.mulf %24, %26 : vector<16x1xf32>
    %28 = vector.broadcast %23 : vector<16x1xf32> to vector<16x32xf32>
    %29 = arith.subf %3, %28 : vector<16x32xf32>
    %30 = math.exp %29 : vector<16x32xf32>
    %cst_15 = arith.constant dense<0.000000e+00> : vector<16xf32>
    %31 = vector.multi_reduction <add>, %30, %cst_15 [1] : vector<16x32xf32> to vector<16xf32>
    %32 = vector.shape_cast %31 : vector<16xf32> to vector<16x1xf32>
    %33 = arith.addf %27, %32 : vector<16x1xf32>
    %c0_16 = arith.constant 0 : index
    %c0_17 = arith.constant 0 : index
    %34 = vector.load %arg6[%c0_16, %c0_17] : memref<16x1xf32, #tpu.memory_space<vmem>>, vector<16x1xf32>
    tpu.vector_store %arg6[%c0_16, %c0_17], %33 {strides = array<i32>} : memref<16x1xf32, #tpu.memory_space<vmem>>, vector<16x1xf32>,
    %c0_18 = arith.constant 0 : index
    %c0_19 = arith.constant 0 : index
    %35 = vector.load %arg5[%c0_18, %c0_19] : memref<16x1xf32, #tpu.memory_space<vmem>>, vector<16x1xf32>
    tpu.vector_store %arg5[%c0_18, %c0_19], %23 {strides = array<i32>} : memref<16x1xf32, #tpu.memory_space<vmem>>, vector<16x1xf32>,
    %c0_i32_20 = arith.constant 0 : i32
    %36 = arith.cmpi eq, %arg1, %c0_i32_20 : i32
    %37 = arith.extui %36 : i1 to i32
    %c0_i32_21 = arith.constant 0 : i32
    %38 = arith.cmpi ne, %37, %c0_i32_21 : i32
    scf.if %38 {
      %c0_22 = arith.constant 0 : index
      %c0_23 = arith.constant 0 : index
      %39 = vector.load %arg5[%c0_22, %c0_23] : memref<16x1xf32, #tpu.memory_space<vmem>>, vector<16x1xf32>
      %c0_24 = arith.constant 0 : index
      %c0_25 = arith.constant 0 : index
      %40 = vector.load %arg6[%c0_24, %c0_25] : memref<16x1xf32, #tpu.memory_space<vmem>>, vector<16x1xf32>
      %41 = math.log %40 : vector<16x1xf32>
      %42 = arith.addf %39, %41 : vector<16x1xf32>
      %c0_26 = arith.constant 0 : index
      %c0_27 = arith.constant 0 : index
      %43 = vector.load %arg7[%c0_26, %c0_27] : memref<16x1xf32, #tpu.memory_space<vmem>>, vector<16x1xf32>
      %44 = arith.subf %42, %43 : vector<16x1xf32>
      %45 = tpu.transpose %44, [1, 0] : vector<16x1xf32> -> vector<1x16xf32>
      %46 = vector.shape_cast %45 : vector<1x16xf32> to vector<1x1x16xf32>
      %c0_28 = arith.constant 0 : index
      %c0_29 = arith.constant 0 : index
      %c0_30 = arith.constant 0 : index
      %47 = vector.load %arg3[%c0_28, %c0_29, %c0_30] : memref<1x1x16xi32, #tpu.memory_space<vmem>>, vector<1x1x16xi32>
      %c-100_i32 = arith.constant -100 : i32
      %48 = vector.broadcast %c-100_i32 : i32 to vector<1x1x16xi32>
      %49 = arith.cmpi eq, %47, %48 : vector<1x1x16xi32>
      %cst_31 = arith.constant 0.000000e+00 : f32
      %50 = vector.broadcast %cst_31 : f32 to vector<1x1x16xf32>
      %51 = arith.select %49, %50, %46 : vector<1x1x16xi1>, vector<1x1x16xf32>
      %c0_32 = arith.constant 0 : index
      %c0_33 = arith.constant 0 : index
      %c0_34 = arith.constant 0 : index
      %52 = vector.load %arg4[%c0_32, %c0_33, %c0_34] : memref<1x1x16xf32, #tpu.memory_space<vmem>>, vector<1x1x16xf32>
      tpu.vector_store %arg4[%c0_32, %c0_33, %c0_34], %51 {strides = array<i32>} : memref<1x1x16xf32, #tpu.memory_space<vmem>>, vector<1x1x16xf32>,
    } else {
    }
    return
  }
  func.func @transform_0(%arg0: i32, %arg1: i32) -> (i32, i32) {
    %c0_i32 = arith.constant 0 : i32
    return %arg0, %arg1 : i32, i32
  }
  func.func @transform_1(%arg0: i32, %arg1: i32) -> (i32, i32, i32) {
    %c0_i32 = arith.constant 0 : i32
    %c0_i32_0 = arith.constant 0 : i32
    %c0_i32_1 = arith.constant 0 : i32
    return %arg0, %c0_i32, %c0_i32_0 : i32, i32, i32
  }
  func.func @transform_2(%arg0: i32, %arg1: i32) -> (i32, i32, i32) {
    %c0_i32 = arith.constant 0 : i32
    %c0_i32_0 = arith.constant 0 : i32
    %c0_i32_1 = arith.constant 0 : i32
    return %arg0, %c0_i32, %c0_i32_0 : i32, i32, i32
  }
}

</mosaic_0001>

<llo_original>
// kernel: tpu_custom_call.1
$region0: #{tpu_custom_call.1}
  #allocation0 [shape = 'u32[]', space=smem, size = 0x4, offset = 0x4, fixed_abs, tag = 'smem constant byte address 0x4 - core index']
  #allocation1 [shape = 'u32[144,128]{1,0:T(1,128)}', space=vmem, size = 0x12000, scoped, tag = 'internal scratch']
  #allocation2 [shape = 'f32[16,1]{1,0:T(8,128)}', space=vmem, size = 0x2000, scoped, tag = 'scratch operand']
  #allocation3 [shape = 'f32[16,1]{1,0:T(8,128)}', space=vmem, size = 0x2000, scoped, tag = 'scratch operand']
  #allocation4 [shape = 'f32[16,1]{1,0:T(8,128)}', space=vmem, size = 0x2000, scoped, tag = 'scratch operand']
  %s0 = inlined_call_operand.hbm [shape: f32[8,32], index: 0, kind: input, shape index: {}]
  %s1 = inlined_call_operand.vmem [shape: s32[1,1,16], index: 1, kind: input, shape index: {}]
  %s2 = inlined_call_operand.hbm [shape: f32[1,1,16], index: 2, kind: output, shape index: {}]
  %s3 = sld [smem:[#allocation0]]
  $region30: #{tpu_custom_call.1} parent=0
    _
  %s5 = ssub.s32 1, %s3
  %s6 = scalar_select 0, %s5, %s3
  $region1: #{tpu_custom_call.1} parent=0
    #allocation5 [shape = 'u8[8192]{0}', space=vmem, size = 0x2000, scoped, tag = 'input window, operand 0, single buffered']
    #allocation6 [shape = 's32[1]{0}', space=sflag, size = 0x4, scoped, tag = 'scoped memory for tpu_custom_call.1']
    #allocation7 [shape = 's32[1]{0}', space=sflag, size = 0x4, scoped, tag = 'scoped memory for tpu_custom_call.1']
    #allocation8 [shape = 'u8[512]{0}', space=vmem, size = 0x400, scoped, tag = 'output window, operand 0, single buffered']
    %7 = vsyncpa [#allocation6], 0
    %8 = vsyncpa [#allocation7], 0
    // Predicated region
    $region2: #{tpu_custom_call.1} parent=1 // pred_check
      _
    $region3: #{tpu_custom_call.1} parent=1 // pred_check_branch
      %10 = sbr.rel (0) target = $region5
    $region4: #{tpu_custom_call.1} parent=1 // pred_region
      %s12 = ssub.s32 256, 128
      %13 = vsyncadd [#allocation6], %s12
      %s14 = sshll.u32 [#allocation5], 4
      %s15 = int_to_ptr.vmem [resolvable:$true] %s14
      %20 = dma.hbm_to_vmem [thread:$0]  %s0, 128, %s15, [#allocation6], 128, 128, 8
    $region5: #{tpu_custom_call.1} parent=1 // pred_fallthru
      _
    // Predicated region
    $region6: #{tpu_custom_call.1} parent=1 // pred_check
      _
    $region7: #{tpu_custom_call.1} parent=1 // pred_check_branch
      %22 = sbr.rel (0) target = $region9
    $region8: #{tpu_custom_call.1} parent=1 // pred_region
      _
    $region9: #{tpu_custom_call.1} parent=1 // pred_fallthru
      _
    // Predicated region
    $region10: #{tpu_custom_call.1} parent=1 // pred_check
      _
    $region11: #{tpu_custom_call.1} parent=1 // pred_check_branch
      %24 = sbr.rel (0) target = $region13
    $region12: #{tpu_custom_call.1} parent=1 // pred_region
      %25 = dma.done [#allocation6], 256
    $region13: #{tpu_custom_call.1} parent=1 // pred_fallthru
      _
    %p26 = scmp.eq.s32.totalorder 0, 0
    // Predicated region
    $region14: #{tpu_custom_call.1} parent=1 // pred_check
      %p27 = pneg %p26
    $region15: #{tpu_custom_call.1} parent=1 // pred_check_branch
      %29 = sbr.rel (%p27) target = $region17
    $region16: #{tpu_custom_call.1} parent=1 // pred_region
      %vm30 = vcmask 7168
      %31 = vst.msk [vmem:[#allocation2] sm:$0xff] %vm30, -inf
      %32 = vst.msk [vmem:[#allocation2 + $0x8] sm:$0xff] %vm30, -inf
      %33 = vst.msk [vmem:[#allocation3] sm:$0xff] %vm30, 0.0
      %34 = vst.msk [vmem:[#allocation3 + $0x8] sm:$0xff] %vm30, 0.0
      %35 = vst.msk [vmem:[#allocation4] sm:$0xff] %vm30, 0.0
      %36 = vst.msk [vmem:[#allocation4 + $0x8] sm:$0xff] %vm30, 0.0
    $region17: #{tpu_custom_call.1} parent=1 // pred_fallthru
      _
    %v37 = vld [vmem:[#allocation5] sm:$0xff]
    %v38 = vld [vmem:[#allocation5 + $0x8] sm:$0xff]
    %v39 = vld [vmem:[%s1] sm:$0x1]
    %40 = vxpose.xlu0.b32.start [1/16] %v39, 128
    %41 = vxpose.xlu0.b32.cont [2/16] 0, 128
    %42 = vxpose.xlu0.b32.cont [3/16] 0, 128
    %43 = vxpose.xlu0.b32.cont [4/16] 0, 128
    %44 = vxpose.xlu0.b32.cont [5/16] 0, 128
    %45 = vxpose.xlu0.b32.cont [6/16] 0, 128
    %46 = vxpose.xlu0.b32.cont [7/16] 0, 128
    %47 = vxpose.xlu0.b32.cont [8/16] 0, 128
    %48 = vxpose.xlu0.b32.cont [9/16] 0, 128
    %49 = vxpose.xlu0.b32.cont [10/16] 0, 128
    %50 = vxpose.xlu0.b32.cont [11/16] 0, 128
    %51 = vxpose.xlu0.b32.cont [12/16] 0, 128
    %52 = vxpose.xlu0.b32.cont [13/16] 0, 128
    %53 = vxpose.xlu0.b32.cont [14/16] 0, 128
    %54 = vxpose.xlu0.b32.cont [15/16] 0, 128
    %55 = vxpose.xlu0.b32.end [16/16] 0, 128
    %v56 = vpop.trf.xlu0
    %v57 = vpop.trf.xlu0
    %v58 = vpop.trf.xlu0
    %v59 = vpop.trf.xlu0
    %v60 = vpop.trf.xlu0
    %v61 = vpop.trf.xlu0
    %v62 = vpop.trf.xlu0
    %v63 = vpop.trf.xlu0
    %v64 = vpop.trf.xlu0
    %v65 = vpop.trf.xlu0
    %v66 = vpop.trf.xlu0
    %v67 = vpop.trf.xlu0
    %v68 = vpop.trf.xlu0
    %v69 = vpop.trf.xlu0
    %v70 = vpop.trf.xlu0
    %v71 = vpop.trf.xlu0
    %s72 = smul.u32 0, 32
    %v73 = vlaneseq
    %v74 = vand.u32 %v73, 127
    %v75 = vstv %s72
    %v76 = vadd.s32 %v75, %v74
    %77 = vset.pattern.permute.xlu0 0
    %78 = vperm.xlu0 %77, %v56
    %v79 = vpop.permute.xlu0 %78
    %80 = vset.pattern.permute.xlu0 0
    %81 = vperm.xlu0 %80, %v57
    %v82 = vpop.permute.xlu0 %81
    %vm83 = vcmp.eq.s32.totalorder %v76, %v79
    %vm84 = vcmp.eq.s32.totalorder %v76, %v82
    %v85 = vld [vmem:[#allocation4] sm:$0xff]
    %v86 = vld [vmem:[#allocation4 + $0x8] sm:$0xff]
    %v87 = vsel %vm83, %v37, 0.0
    %v88 = vsel %vm84, %v38, 0.0
    %vm89 = vcmask 261120
    %v90 = vsel %vm89, %v87, 0.0
    %91 = vadd.xlane.f32.xlu0 %v90
    %v92 = vpop.xlane.xlu0 %91
    %v93 = vsel %vm89, %v88, 0.0
    %94 = vadd.xlane.f32.xlu0 %v93
    %v95 = vpop.xlane.xlu0 %94
    %v96 = vadd.f32 %v85, %v92
    %v97 = vadd.f32 %v86, %v95
    %vm98 = vcmask 7168
    %99 = vst.msk [vmem:[#allocation4] sm:$0xff] %vm98, %v96
    %100 = vst.msk [vmem:[#allocation4 + $0x8] sm:$0xff] %vm98, %v97
    %v101 = vsel %vm89, %v37, -inf
    %102 = vmax.xlane.f32.xlu0 %v101
    %v103 = vpop.xlane.xlu0 %102
    %v104 = vsel %vm89, %v38, -inf
    %105 = vmax.xlane.f32.xlu0 %v104
    %v106 = vpop.xlane.xlu0 %105
    %v107 = vld [vmem:[#allocation2] sm:$0xff]
    %v108 = vld [vmem:[#allocation2 + $0x8] sm:$0xff]
    %v109 = vmax.f32 %v107, %v103
    %v110 = vmax.f32 %v108, %v106
    %v111 = vld [vmem:[#allocation3] sm:$0xff]
    %v112 = vld [vmem:[#allocation3 + $0x8] sm:$0xff]
    %v113 = vsub.f32 %v107, %v109
    %v114 = vsub.f32 %v108, %v110
    %v115 = vmul.f32 %v113, 1.442695
    %v116 = vpow.pop %v115
    %v117 = vmul.f32 %v114, 1.442695
    %v118 = vpow.pop %v117
    %v119 = vmul.f32 %v111, %v116
    %v120 = vmul.f32 %v112, %v118
    %122 = vset.pattern.permute.xlu0 0
    %123 = vperm.xlu0 %122, %v109
    %v124 = vpop.permute.xlu0 %123
    %127 = vset.pattern.permute.xlu0 0
    %128 = vperm.xlu0 %127, %v110
    %v129 = vpop.permute.xlu0 %128
    %v131 = vsub.f32 %v37, %v124
    %v132 = vsub.f32 %v38, %v129
    %v133 = vmul.f32 %v131, 1.442695
    %v134 = vpow.pop %v133
    %v135 = vmul.f32 %v132, 1.442695
    %v136 = vpow.pop %v135
    %v137 = vsel %vm89, %v134, 0.0
    %138 = vadd.xlane.f32.xlu0 %v137
    %v139 = vpop.xlane.xlu0 %138
    %v140 = vsel %vm89, %v136, 0.0
    %141 = vadd.xlane.f32.xlu0 %v140
    %v142 = vpop.xlane.xlu0 %141
    %v143 = vadd.f32 %v119, %v139
    %v144 = vadd.f32 %v120, %v142
    %145 = vst.msk [vmem:[#allocation3] sm:$0xff] %vm98, %v143
    %146 = vst.msk [vmem:[#allocation3 + $0x8] sm:$0xff] %vm98, %v144
    %147 = vst.msk [vmem:[#allocation2] sm:$0xff] %vm98, %v109
    %148 = vst.msk [vmem:[#allocation2 + $0x8] sm:$0xff] %vm98, %v110
    // Predicated region
    $region18: #{tpu_custom_call.1} parent=1 // pred_check
      %p149 = pneg %p26
    $region19: #{tpu_custom_call.1} parent=1 // pred_check_branch
      %151 = sbr.rel (%p149) target = $region21
    $region20: #{tpu_custom_call.1} parent=1 // pred_region
      %v152 = vld [vmem:[#allocation2] sm:$0xff]
      %v153 = vld [vmem:[#allocation2 + $0x8] sm:$0xff]
      %v154 = vld [vmem:[#allocation3] sm:$0xff]
      %v155 = vld [vmem:[#allocation3 + $0x8] sm:$0xff]
      %v156 = vlog2.pop %v154
      %v157 = vmul.f32 %v156, 0.6931472
      %v158 = vlog2.pop %v155
      %v159 = vmul.f32 %v158, 0.6931472
      %v160 = vadd.f32 %v152, %v157
      %v161 = vadd.f32 %v153, %v159
      %v162 = vld [vmem:[#allocation4] sm:$0xff]
      %v163 = vld [vmem:[#allocation4 + $0x8] sm:$0xff]
      %v164 = vsub.f32 %v160, %v162
      %v165 = vsub.f32 %v161, %v163
      %166 = vxpose.xlu0.b32.start [1/16] %v164, 128
      %167 = vxpose.xlu0.b32.cont [2/16] %v165, 128
      %168 = vxpose.xlu0.b32.cont [3/16] 0.0, 128
      %169 = vxpose.xlu0.b32.cont [4/16] 0.0, 128
      %170 = vxpose.xlu0.b32.cont [5/16] 0.0, 128
      %171 = vxpose.xlu0.b32.cont [6/16] 0.0, 128
      %172 = vxpose.xlu0.b32.cont [7/16] 0.0, 128
      %173 = vxpose.xlu0.b32.cont [8/16] 0.0, 128
      %174 = vxpose.xlu0.b32.cont [9/16] 0.0, 128
      %175 = vxpose.xlu0.b32.cont [10/16] 0.0, 128
      %176 = vxpose.xlu0.b32.cont [11/16] 0.0, 128
      %177 = vxpose.xlu0.b32.cont [12/16] 0.0, 128
      %178 = vxpose.xlu0.b32.cont [13/16] 0.0, 128
      %179 = vxpose.xlu0.b32.cont [14/16] 0.0, 128
      %180 = vxpose.xlu0.b32.cont [15/16] 0.0, 128
      %181 = vxpose.xlu0.b32.end [16/16] 0.0, 128
      %v182 = vpop.trf.xlu0
      %v183 = vpop.trf.xlu0
      %v184 = vpop.trf.xlu0
      %v185 = vpop.trf.xlu0
      %v186 = vpop.trf.xlu0
      %v187 = vpop.trf.xlu0
      %v188 = vpop.trf.xlu0
      %v189 = vpop.trf.xlu0
      %v190 = vpop.trf.xlu0
      %v191 = vpop.trf.xlu0
      %v192 = vpop.trf.xlu0
      %v193 = vpop.trf.xlu0
      %v194 = vpop.trf.xlu0
      %v195 = vpop.trf.xlu0
      %v196 = vpop.trf.xlu0
      %v197 = vpop.trf.xlu0
      %v198 = vld [vmem:[%s1] sm:$0x1]
      %vm199 = vcmp.eq.s32.totalorder %v198, 4294967196
      %v200 = vsel %vm199, 0.0, %v182
      %vm201 = vcmask 122880
      %202 = vst.msk [vmem:[#allocation8] sm:$0x1] %vm201, %v200
    $region21: #{tpu_custom_call.1} parent=1 // pred_fallthru
      _
    // Predicated region
    $region22: #{tpu_custom_call.1} parent=1 // pred_check
      _
    $region23: #{tpu_custom_call.1} parent=1 // pred_check_branch
      %204 = sbr.rel (0) target = $region25
    $region24: #{tpu_custom_call.1} parent=1 // pred_region
      %s206 = ssub.s32 16, 16
      %207 = vsyncadd [#allocation7], %s206
      %s209 = sshll.u32 [#allocation8], 4
      %s210 = int_to_ptr.vmem [resolvable:$true] %s209
      %212 = dma.vmem_to_hbm [thread:$0]  %s210, 16, %s2, [#allocation7]
    $region25: #{tpu_custom_call.1} parent=1 // pred_fallthru
      _
    // Predicated region
    $region26: #{tpu_custom_call.1} parent=1 // pred_check
      _
    $region27: #{tpu_custom_call.1} parent=1 // pred_check_branch
      %214 = sbr.rel (0) target = $region29
    $region28: #{tpu_custom_call.1} parent=1 // pred_region
      %215 = dma.done [#allocation7], 16
    $region29: #{tpu_custom_call.1} parent=1 // pred_fallthru
      _
    %216 = vsyncpa [#allocation6], 1
    %217 = vsyncpa [#allocation7], 1

</llo_original>
